<compile_context>
chip_gen: v7x
topology: tpu7x:2x2x1
jax: 0.10.0
libtpu: 0.0.40
codegen_flags: <defaults>
</compile_context>

<pallas_src>
import functools

import jax
import jax.numpy as jnp
from jax.experimental import pallas as pl
from jax.experimental.pallas import tpu as pltpu


def _round_up(n, m):
    return ((n + m - 1) // m) * m


def _elu(x):
    # ELU with alpha=1.0 (PyTorch default): x if x > 0 else exp(x) - 1.
    # exp(min(x, 0)) keeps the EUP input bounded on the positive branch.
    return jnp.where(x > 0, x, jnp.exp(jnp.minimum(x, 0.0)) - 1.0)


def _mlp_decoder_kernel(x_ref, w1_ref, b1_ref, w2_ref, b2_ref, w3_ref, b3_ref,
                        o_ref, h2_ref, *, activation):
    """Grid: (batch tile i, output-column tile j); j is the inner axis."""

    # Layers 1-2 depend only on the batch tile -> compute once per batch tile
    # (j == 0) and keep the bf16 result resident in VMEM scratch.
    @pl.when(pl.program_id(1) == 0)
    def _():
        x = x_ref[...]                                            # bf16 tile
        h = jnp.dot(x, w1_ref[...], preferred_element_type=jnp.float32)
        h = _elu(h + b1_ref[...])
        h = jnp.dot(h.astype(w2_ref.dtype), w2_ref[...],
                    preferred_element_type=jnp.float32)
        h = _elu(h + b2_ref[...])
        h2_ref[...] = h.astype(h2_ref.dtype)

    # Layer 3 + output activation for this column tile.
    h3 = jnp.dot(h2_ref[...], w3_ref[...], preferred_element_type=jnp.float32)
    h3 = h3 + b3_ref[...]

    if activation == "identity":
        out = h3
    elif activation == "sigmoid":
        out = jax.nn.sigmoid(h3)
    elif activation == "tanh":
        # TODO(synk): on v6e/v7x a bf16 tanh (native bf16 EUP) would be ~2x
        # faster once stores are overlapped; kept f32 for v5e parity.
        out = jnp.tanh(h3)
    else:
        raise ValueError(f"unknown activation: {activation}")

    o_ref[...] = out.astype(o_ref.dtype)


def prepare_params(params, *, compute_dtype=jnp.bfloat16, block_n=256):
    """One-time parameter prep (hoist out of the per-call path / cache it).

    Casts weights to the MXU compute dtype, reshapes biases to f32 (1, n)
    rows, and pads w3/b3 so the output feature dim is a multiple of block_n
    (lane-dense, unmasked stores).
    """
    w1, b1 = params["w1"], params["b1"]
    w2, b2 = params["w2"], params["b2"]
    w3, b3 = params["w3"], params["b3"]

    latent_dim, h1 = w1.shape
    h2 = w2.shape[1]
    input_dim = w3.shape[1]

    # Lane-dense output tiling: block_n a multiple of 128, d_pad a multiple of
    # block_n (256 matches the 256-wide MXU on v6e/v7x; 128 suffices on v5e).
    block_n = max(128, _round_up(int(block_n), 128))
    d_pad = _round_up(input_dim, 128)
    block_n = min(block_n, d_pad)
    d_pad = _round_up(d_pad, block_n)

    # Normalize bias shapes to (1, n) f32 rows before padding.
    b1r = jnp.reshape(b1, (1, h1)).astype(jnp.float32)
    b2r = jnp.reshape(b2, (1, h2)).astype(jnp.float32)
    b3r = jnp.reshape(b3, (1, input_dim)).astype(jnp.float32)

    w3p, b3p = w3, b3r
    if d_pad != input_dim:
        w3p = jnp.pad(w3p, ((0, 0), (0, d_pad - input_dim)))
        b3p = jnp.pad(b3p, ((0, 0), (0, d_pad - input_dim)))

    return {
        "_prepared": True,
        "w1": w1.astype(compute_dtype), "b1": b1r,
        "w2": w2.astype(compute_dtype), "b2": b2r,
        "w3": w3p.astype(compute_dtype), "b3": b3p,
        "latent_dim": int(latent_dim), "h1": int(h1), "h2": int(h2),
        "input_dim": int(input_dim), "d_pad": int(d_pad),
        "block_n": int(block_n), "compute_dtype": compute_dtype,
    }


def mlp_decoder_pallas(x, params, *, activation="identity", block_b=128,
                       block_n=256, compute_dtype=jnp.bfloat16, out_dtype=None,
                       trim_output=True, vmem_limit_bytes=None):
    """x: (B, latent_dim). params: raw {w1,b1,...} or prepare_params() output.

    out_dtype: output store dtype (default: x.dtype). Pass jnp.bfloat16 to
      halve the dominant output HBM term when the consumer tolerates it.
    trim_output: if False, returns the lane-padded (b_pad, d_pad) slab and
      skips the unaligned epilogue slice (fuse the un-pad downstream).
    """
    if activation not in ("identity", "sigmoid", "tanh"):
        raise ValueError(f"unknown activation: {activation}")

    if not isinstance(params, dict) or not params.get("_prepared", False):
        # Slow path: per-call prep. Prefer calling prepare_params() once.
        params = prepare_params(params, compute_dtype=compute_dtype,
                                block_n=block_n)

    w1c, b1r = params["w1"], params["b1"]
    w2c, b2r = params["w2"], params["b2"]
    w3c, b3r = params["w3"], params["b3"]
    latent_dim = params["latent_dim"]
    h1, h2 = params["h1"], params["h2"]
    input_dim = params["input_dim"]
    d_pad = params["d_pad"]
    block_n = params["block_n"]
    compute_dtype = params["compute_dtype"]

    B = x.shape[0]
    if x.shape[1] != latent_dim:
        raise ValueError("x feature dim does not match latent_dim")
    out_dtype = x.dtype if out_dtype is None else out_dtype

    # Batch tile: multiple of 8 sublanes, capped by the (padded) batch size.
    block_b = max(8, min(int(block_b), _round_up(B, 8)))
    block_b = _round_up(block_b, 8)
    b_pad = _round_up(B, block_b)

    # Cast x to the compute dtype in the wrapper (bf16 DMA, no per-step cast)
    # and zero-pad the batch so padded rows never feed garbage into exp().
    xp = x.astype(compute_dtype)
    if b_pad != B:
        xp = jnp.pad(xp, ((0, b_pad - B), (0, 0)))

    grid = (b_pad // block_b, d_pad // block_n)

    kernel = functools.partial(_mlp_decoder_kernel, activation=activation)

    # --- VMEM budget guard -------------------------------------------------
    cds = jnp.dtype(compute_dtype).itemsize
    ods = jnp.dtype(out_dtype).itemsize
    vmem_est = (
        2 * (block_b * latent_dim * cds                 # x tile (dbl-buffered)
             + block_b * block_n * ods                  # out tile
             + h2 * block_n * cds + block_n * 4         # w3 / b3 column tiles
             + latent_dim * h1 * cds + h1 * 4           # w1 / b1 (resident)
             + h1 * h2 * cds + h2 * 4)                  # w2 / b2 (resident)
        + block_b * h2 * cds                            # h2 scratch
        + block_b * (h1 + h2 + block_n) * 4)            # f32 intermediates
    if vmem_limit_bytes is None and vmem_est > (16 << 20):
        # v5e default scoped limit is 16 MiB; raise it with headroom, but stay
        # under v7x's 64 MiB physical VMEM.
        vmem_limit_bytes = int(min(vmem_est + (8 << 20), 60 << 20))
    # TODO(synk): for very large latent_dim (w2 residency alone near the v7x
    # limit) add K/N tiling of w2 instead of only raising vmem_limit_bytes.

    # --- Cost estimate -------------------------------------------------------
    flops = 2 * b_pad * (latent_dim * h1 + h1 * h2 + h2 * d_pad)
    transcendentals = b_pad * (
        h1 + h2 + (d_pad if activation in ("sigmoid", "tanh") else 0))
    bytes_accessed = (
        b_pad * latent_dim * cds
        + (latent_dim * h1 + h1 * h2 + h2 * d_pad) * cds
        + (h1 + h2 + d_pad) * 4
        + b_pad * d_pad * ods)

    out = pl.pallas_call(
        kernel,
        out_shape=jax.ShapeDtypeStruct((b_pad, d_pad), out_dtype),
        grid_spec=pltpu.PrefetchScalarGridSpec(
            num_scalar_prefetch=0,
            grid=grid,
            in_specs=[
                # x: depends only on the batch tile.
                pl.BlockSpec((block_b, latent_dim), lambda i, j: (i, 0)),
                # Layers 1-2 weights/biases: constant block index -> kept
                # resident in VMEM across all grid steps (no re-DMA).
                pl.BlockSpec((latent_dim, h1), lambda i, j: (0, 0)),
                pl.BlockSpec((1, h1), lambda i, j: (0, 0)),
                pl.BlockSpec((h1, h2), lambda i, j: (0, 0)),
                pl.BlockSpec((1, h2), lambda i, j: (0, 0)),
                # Layer-3 weight/bias: tiled along the output-column axis.
                pl.BlockSpec((h2, block_n), lambda i, j: (0, j)),
                pl.BlockSpec((1, block_n), lambda i, j: (0, j)),
            ],
            out_specs=pl.BlockSpec((block_b, block_n), lambda i, j: (i, j)),
            scratch_shapes=[pltpu.VMEM((block_b, h2), compute_dtype)],
        ),
        compiler_params=pltpu.CompilerParams(
            dimension_semantics=("parallel", "arbitrary"),
            vmem_limit_bytes=vmem_limit_bytes),
        cost_estimate=pl.CostEstimate(
            flops=flops,
            transcendentals=transcendentals,
            bytes_accessed=bytes_accessed),
    )(xp, w1c, b1r, w2c, b2r, w3c, b3r)

    if not trim_output:
        return out                       # (b_pad, d_pad) lane-padded slab
    if b_pad != B:
        out = out[:B]
    if d_pad != input_dim:
        out = out[:, :input_dim]
    return out


def init_params(key, latent_dim, input_dim, dtype=jnp.float32):
    """Deterministic synthetic parameters (shapes match the nn.Module)."""
    ks = jax.random.split(key, 6)
    h1, h2 = 8 * latent_dim, 16 * latent_dim

    def lin(kw, kb, fan_in, fan_out):
        bound = 1.0 / jnp.sqrt(fan_in)
        w = jax.random.uniform(kw, (fan_in, fan_out), dtype, -bound, bound)
        b = jax.random.uniform(kb, (fan_out,), dtype, -bound, bound)
        return w, b

    w1, b1 = lin(ks[0], ks[1], latent_dim, h1)
    w2, b2 = lin(ks[2], ks[3], h1, h2)
    w3, b3 = lin(ks[4], ks[5], h2, input_dim)
    return {"w1": w1, "b1": b1, "w2": w2, "b2": b2, "w3": w3, "b3": b3}


def mlp_decoder_ref(x, params, activation="identity",
                    compute_dtype=jnp.float32):
    """Pure-JAX reference with the same mixed-precision matmul scheme."""
    cd = compute_dtype

    def dense(a, w, b):
        y = jnp.dot(a.astype(cd), w.astype(cd),
                    preferred_element_type=jnp.float32)
        return y + b.reshape(1, -1).astype(jnp.float32)

    h = _elu(dense(x, params["w1"], params["b1"]))
    h = _elu(dense(h, params["w2"], params["b2"]))
    h = dense(h, params["w3"], params["b3"])
    if activation == "sigmoid":
        h = jax.nn.sigmoid(h)
    elif activation == "tanh":
        h = jnp.tanh(h)
    return h


if __name__ == "__main__":
    key = jax.random.PRNGKey(0)
    k_x, k_p = jax.random.split(key)

    batch = 64
    latent_dim = 8           # -> hidden dims 64 and 128
    input_dim = 784          # MNIST pixels; padded to 1024 lanes internally
    activation = "tanh"

    x = jax.random.normal(k_x, (batch, latent_dim), dtype=jnp.float32)
    params = init_params(k_p, latent_dim, input_dim)

    # One-time parameter prep, hoisted out of the call path (cacheable).
    prepared = prepare_params(params, compute_dtype=jnp.bfloat16, block_n=256)

    out = mlp_decoder_pallas(x, prepared, activation=activation, block_b=128)
    out = jax.block_until_ready(out)

    # Reference with the same bf16-operand / f32-accumulation scheme.
    ref = mlp_decoder_ref(x, params, activation=activation,
                          compute_dtype=jnp.bfloat16)

    assert out.shape == (batch, input_dim)
    max_err = float(jnp.max(jnp.abs(out - ref)))
    assert jnp.allclose(out, ref, atol=5e-3, rtol=5e-3), max_err

    print("KERNEL_OK")
</pallas_src>

<mosaic_0001>
module attributes {stable_mosaic.version = 11 : i64} {
  func.func @_mlp_decoder_kernel(%arg0: i32, %arg1: i32, %arg2: memref<64x8xbf16, #tpu.memory_space<vmem>>, %arg3: memref<8x64xbf16, #tpu.memory_space<vmem>>, %arg4: memref<1x64xf32, #tpu.memory_space<vmem>>, %arg5: memref<64x128xbf16, #tpu.memory_space<vmem>>, %arg6: memref<1x128xf32, #tpu.memory_space<vmem>>, %arg7: memref<128x256xbf16, #tpu.memory_space<vmem>>, %arg8: memref<1x256xf32, #tpu.memory_space<vmem>>, %arg9: memref<64x256xf32, #tpu.memory_space<vmem>>, %arg10: memref<64x128xbf16, #tpu.memory_space<vmem>>) attributes {dimension_semantics = [#tpu.dimension_semantics<parallel>, #tpu.dimension_semantics<arbitrary>], iteration_bounds = array<i64: 1, 4>, scalar_prefetch = 0 : i64, scratch_operands = 1 : i64, tpu.core_type = #tpu.core_type<tc>, window_params = [{transform_indices = @transform_0, window_bounds = array<i64: 64, 8>}, {pipeline_mode = #tpu.pipeline_mode<synchronous>, transform_indices = @transform_1, window_bounds = array<i64: 8, 64>}, {pipeline_mode = #tpu.pipeline_mode<synchronous>, transform_indices = @transform_2, window_bounds = array<i64: 1, 64>}, {pipeline_mode = #tpu.pipeline_mode<synchronous>, transform_indices = @transform_3, window_bounds = array<i64: 64, 128>}, {pipeline_mode = #tpu.pipeline_mode<synchronous>, transform_indices = @transform_4, window_bounds = array<i64: 1, 128>}, {transform_indices = @transform_5, window_bounds = array<i64: 128, 256>}, {transform_indices = @transform_6, window_bounds = array<i64: 1, 256>}, {transform_indices = @transform_7, window_bounds = array<i64: 64, 256>}]} {
    %c0_i32 = arith.constant 0 : i32
    %0 = arith.cmpi eq, %arg1, %c0_i32 : i32
    %1 = arith.extui %0 : i1 to i32
    %c0_i32_0 = arith.constant 0 : i32
    %2 = arith.cmpi ne, %1, %c0_i32_0 : i32
    scf.if %2 {
      %c0_8 = arith.constant 0 : index
      %c0_9 = arith.constant 0 : index
      %11 = vector.load %arg2[%c0_8, %c0_9] : memref<64x8xbf16, #tpu.memory_space<vmem>>, vector<64x8xbf16>
      %c0_10 = arith.constant 0 : index
      %c0_11 = arith.constant 0 : index
      %12 = vector.load %arg3[%c0_10, %c0_11] : memref<8x64xbf16, #tpu.memory_space<vmem>>, vector<8x64xbf16>
      %cst_12 = arith.constant dense<0.000000e+00> : vector<64x64xf32>
      %13 = tpu.matmul %11, %12, %cst_12 {dimension_numbers = #tpu.dot_dimension_numbers<[1], [0], [0], [1], [0, 0, 1, 1], [], []>} : vector<64x8xbf16>, vector<8x64xbf16>, vector<64x64xf32> -> vector<64x64xf32>
      %c0_13 = arith.constant 0 : index
      %c0_14 = arith.constant 0 : index
      %14 = vector.load %arg4[%c0_13, %c0_14] : memref<1x64xf32, #tpu.memory_space<vmem>>, vector<1x64xf32>
      %15 = vector.broadcast %14 : vector<1x64xf32> to vector<64x64xf32>
      %16 = arith.addf %13, %15 : vector<64x64xf32>
      %cst_15 = arith.constant 0.000000e+00 : f32
      %17 = vector.broadcast %cst_15 : f32 to vector<64x64xf32>
      %18 = arith.cmpf ogt, %16, %17 : vector<64x64xf32>
      %cst_16 = arith.constant 0.000000e+00 : f32
      %19 = vector.broadcast %cst_16 : f32 to vector<64x64xf32>
      %20 = arith.minimumf %16, %19 : vector<64x64xf32>
      %21 = math.exp %20 : vector<64x64xf32>
      %cst_17 = arith.constant 1.000000e+00 : f32
      %22 = vector.broadcast %cst_17 : f32 to vector<64x64xf32>
      %23 = arith.subf %21, %22 : vector<64x64xf32>
      %24 = arith.select %18, %16, %23 : vector<64x64xi1>, vector<64x64xf32>
      %25 = arith.truncf %24 : vector<64x64xf32> to vector<64x64xbf16>
      %c0_18 = arith.constant 0 : index
      %c0_19 = arith.constant 0 : index
      %26 = vector.load %arg5[%c0_18, %c0_19] : memref<64x128xbf16, #tpu.memory_space<vmem>>, vector<64x128xbf16>
      %cst_20 = arith.constant dense<0.000000e+00> : vector<64x128xf32>
      %27 = tpu.matmul %25, %26, %cst_20 {dimension_numbers = #tpu.dot_dimension_numbers<[1], [0], [0], [1], [0, 0, 1, 1], [], []>} : vector<64x64xbf16>, vector<64x128xbf16>, vector<64x128xf32> -> vector<64x128xf32>
      %c0_21 = arith.constant 0 : index
      %c0_22 = arith.constant 0 : index
      %28 = vector.load %arg6[%c0_21, %c0_22] : memref<1x128xf32, #tpu.memory_space<vmem>>, vector<1x128xf32>
      %29 = vector.broadcast %28 : vector<1x128xf32> to vector<64x128xf32>
      %30 = arith.addf %27, %29 : vector<64x128xf32>
      %cst_23 = arith.constant 0.000000e+00 : f32
      %31 = vector.broadcast %cst_23 : f32 to vector<64x128xf32>
      %32 = arith.cmpf ogt, %30, %31 : vector<64x128xf32>
      %cst_24 = arith.constant 0.000000e+00 : f32
      %33 = vector.broadcast %cst_24 : f32 to vector<64x128xf32>
      %34 = arith.minimumf %30, %33 : vector<64x128xf32>
      %35 = math.exp %34 : vector<64x128xf32>
      %cst_25 = arith.constant 1.000000e+00 : f32
      %36 = vector.broadcast %cst_25 : f32 to vector<64x128xf32>
      %37 = arith.subf %35, %36 : vector<64x128xf32>
      %38 = arith.select %32, %30, %37 : vector<64x128xi1>, vector<64x128xf32>
      %39 = arith.truncf %38 : vector<64x128xf32> to vector<64x128xbf16>
      %c0_26 = arith.constant 0 : index
      %c0_27 = arith.constant 0 : index
      %40 = vector.load %arg10[%c0_26, %c0_27] : memref<64x128xbf16, #tpu.memory_space<vmem>>, vector<64x128xbf16>
      tpu.vector_store %arg10[%c0_26, %c0_27], %39 {strides = array<i32>} : memref<64x128xbf16, #tpu.memory_space<vmem>>, vector<64x128xbf16>,
    } else {
    }
    %c0 = arith.constant 0 : index
    %c0_1 = arith.constant 0 : index
    %3 = vector.load %arg10[%c0, %c0_1] : memref<64x128xbf16, #tpu.memory_space<vmem>>, vector<64x128xbf16>
    %c0_2 = arith.constant 0 : index
    %c0_3 = arith.constant 0 : index
    %4 = vector.load %arg7[%c0_2, %c0_3] : memref<128x256xbf16, #tpu.memory_space<vmem>>, vector<128x256xbf16>
    %cst = arith.constant dense<0.000000e+00> : vector<64x256xf32>
    %5 = tpu.matmul %3, %4, %cst {dimension_numbers = #tpu.dot_dimension_numbers<[1], [0], [0], [1], [0, 0, 1, 1], [], []>} : vector<64x128xbf16>, vector<128x256xbf16>, vector<64x256xf32> -> vector<64x256xf32>
    %c0_4 = arith.constant 0 : index
    %c0_5 = arith.constant 0 : index
    %6 = vector.load %arg8[%c0_4, %c0_5] : memref<1x256xf32, #tpu.memory_space<vmem>>, vector<1x256xf32>
    %7 = vector.broadcast %6 : vector<1x256xf32> to vector<64x256xf32>
    %8 = arith.addf %5, %7 : vector<64x256xf32>
    %9 = math.tanh %8 : vector<64x256xf32>
    %c0_6 = arith.constant 0 : index
    %c0_7 = arith.constant 0 : index
    %10 = vector.load %arg9[%c0_6, %c0_7] : memref<64x256xf32, #tpu.memory_space<vmem>>, vector<64x256xf32>
    tpu.vector_store %arg9[%c0_6, %c0_7], %9 {strides = array<i32>} : memref<64x256xf32, #tpu.memory_space<vmem>>, vector<64x256xf32>,
    return
  }
  func.func @transform_0(%arg0: i32, %arg1: i32) -> (i32, i32) {
    %c0_i32 = arith.constant 0 : i32
    %c0_i32_0 = arith.constant 0 : i32
    return %arg0, %c0_i32 : i32, i32
  }
  func.func @transform_1(%arg0: i32, %arg1: i32) -> (i32, i32) {
    %c0_i32 = arith.constant 0 : i32
    %c0_i32_0 = arith.constant 0 : i32
    %c0_i32_1 = arith.constant 0 : i32
    return %c0_i32, %c0_i32_0 : i32, i32
  }
  func.func @transform_2(%arg0: i32, %arg1: i32) -> (i32, i32) {
    %c0_i32 = arith.constant 0 : i32
    %c0_i32_0 = arith.constant 0 : i32
    %c0_i32_1 = arith.constant 0 : i32
    return %c0_i32, %c0_i32_0 : i32, i32
  }
  func.func @transform_3(%arg0: i32, %arg1: i32) -> (i32, i32) {
    %c0_i32 = arith.constant 0 : i32
    %c0_i32_0 = arith.constant 0 : i32
    %c0_i32_1 = arith.constant 0 : i32
    return %c0_i32, %c0_i32_0 : i32, i32
  }
  func.func @transform_4(%arg0: i32, %arg1: i32) -> (i32, i32) {
    %c0_i32 = arith.constant 0 : i32
    %c0_i32_0 = arith.constant 0 : i32
    %c0_i32_1 = arith.constant 0 : i32
    return %c0_i32, %c0_i32_0 : i32, i32
  }
  func.func @transform_5(%arg0: i32, %arg1: i32) -> (i32, i32) {
    %c0_i32 = arith.constant 0 : i32
    %c0_i32_0 = arith.constant 0 : i32
    return %c0_i32, %arg1 : i32, i32
  }
  func.func @transform_6(%arg0: i32, %arg1: i32) -> (i32, i32) {
    %c0_i32 = arith.constant 0 : i32
    %c0_i32_0 = arith.constant 0 : i32
    return %c0_i32, %arg1 : i32, i32
  }
  func.func @transform_7(%arg0: i32, %arg1: i32) -> (i32, i32) {
    %c0_i32 = arith.constant 0 : i32
    return %arg0, %arg1 : i32, i32
  }
}

</mosaic_0001>

<llo_original>
// kernel: tpu_custom_call.1
$region0: #{tpu_custom_call.1}
  #allocation0 [shape = 'u32[]', space=smem, size = 0x4, offset = 0x4, fixed_abs, tag = 'smem constant byte address 0x4 - core index']
  #allocation1 [shape = 'u32[144,128]{1,0:T(1,128)}', space=vmem, size = 0x12000, scoped, tag = 'internal scratch']
  #allocation2 [shape = 'bf16[64,128]{1,0:T(16,128)(2,1)}', space=vmem, size = 0x4000, scoped, tag = 'scratch operand']
  %s0 = inlined_call_operand.vmem [shape: bf16[64,8], index: 0, kind: input, shape index: {}]
  %s1 = inlined_call_operand.vmem [shape: bf16[8,64], index: 1, kind: input, shape index: {}]
  %s2 = inlined_call_operand.vmem [shape: f32[1,64], index: 2, kind: input, shape index: {}]
  %s3 = inlined_call_operand.vmem [shape: bf16[64,128], index: 3, kind: input, shape index: {}]
  %s4 = inlined_call_operand.vmem [shape: f32[1,128], index: 4, kind: input, shape index: {}]
  %s5 = inlined_call_operand.hbm [shape: bf16[128,1024], index: 5, kind: input, shape index: {}]
  %s6 = inlined_call_operand.vmem [shape: f32[1,1024], index: 6, kind: input, shape index: {}]
  %s7 = inlined_call_operand.hbm [shape: f32[64,1024], index: 7, kind: output, shape index: {}]
  %s8 = sld [smem:[#allocation0]]
  $region69: #{tpu_custom_call.1} parent=0
    _
  %s10 = ssub.s32 1, %s8
  %s11 = scalar_select 0, %s10, %s8
  $region1: #{tpu_custom_call.1} parent=0
    #allocation3 [shape = 'u8[131072]{0}', space=vmem, size = 0x20000, scoped, tag = 'input window, operand 5']
    #allocation4 [shape = 's32[2]{0}', space=sflag, size = 0x8, scoped, tag = 'scoped memory for tpu_custom_call.1']
    #allocation5 [shape = 's32[2]{0}', space=sflag, size = 0x8, scoped, tag = 'scoped memory for tpu_custom_call.1']
    #allocation6 [shape = 'u8[131072]{0}', space=vmem, size = 0x20000, scoped, tag = 'output window, operand 0']
    %12 = vsyncpa [#allocation4], 0
    %s13 = scalar_lea.sflag [#allocation4], 1
    %14 = vsyncpa %s13, 0
    %15 = vsyncpa [#allocation5], 0
    %s16 = scalar_lea.sflag [#allocation5], 1
    %17 = vsyncpa %s16, 0
    loop: start=0, step=1, limit=6
    $region2: #{tpu_custom_call.1} parent=1 // loop_pre_header
      _
    $region3: #{tpu_custom_call.1} parent=1 // loop_header
      %s19 = sphi 0, %s23
      %p20 = scmp.ge.s32.totalorder %s19, 6
      %s26 = sphi 0, %s38
      %s27 = sphi 0, %s34
      %s28 = sphi 0, %s26
      %s29 = sphi 0, %s27
      %s30 = sphi 0, %s28
      %s31 = sphi 0, %s29
      %s41 = sphi 0, %s43
      %s44 = sphi 0, %s41
      %s45 = sphi 0, %s44
      %s61 = sphi 0, %s45
      %s65 = sphi 0, %s65
      %s67 = sphi 0, %s65
      %s68 = sphi 0, %s67
      %s82 = sphi 0, %s68
      %s86 = sphi 0, %s86
      %s88 = sphi 0, %s86
      %s89 = sphi 0, %s88
      %s103 = sphi 0, %s89
      %s107 = sphi 0, %s107
      %s109 = sphi 0, %s107
      %s110 = sphi 0, %s109
      %s124 = sphi 0, %s110
      %s128 = sphi 0, %s128
      %s130 = sphi 0, %s128
      %s131 = sphi 0, %s130
      %s145 = sphi 0, %s131
      %s151 = sphi 0, %s153
      %s154 = sphi 0, %s151
      %s155 = sphi 0, %s154
      %s171 = sphi 0, %s155
      %s177 = sphi 0, %s179
      %s180 = sphi 0, %s177
      %s181 = sphi 0, %s180
      %s197 = sphi 0, %s181
      %s205 = sphi 0, %s207
      %s208 = sphi 0, %s205
      %s209 = sphi 0, %s208
      %s225 = sphi 0, %s209
    $region4: #{tpu_custom_call.1} parent=1 // loop_header_branch
      %22 = sbr.rel (%p20) target = $region8
    $region5: #{tpu_custom_call.1} parent=1 // loop_body
      %s24 = ssub.s32 %s19, 1
      %s25 = ssub.s32 %s19, 2
      %s32 = sadd.s32 1, %s27
      %p33 = scmp.ge.s32.totalorder %s32, 4
      %s34 = scalar_select %p33, 0, %s32
      %s35 = sadd.s32 1, %s26
      %s36 = scalar_select %p33, %s35, %s26
      %p37 = scmp.ge.s32.totalorder %s36, 1
      %s38 = scalar_select %p37, 0, %s36
      %s39 = ssub.s32 %s26, %s38
      %p40 = scmp.eq.s32.totalorder %s39, 0
      %s42 = sadd.s32 %s41, 1
      %s43 = scalar_select %p40, %s41, %s42
      %p46 = pneg %p40
      %p47 = scmp.eq.s32.totalorder %s19, 3
      %p48 = por %p46, %p47
      %p49 = scmp.ne.s32.totalorder %s41, %s44
      %p50 = scmp.eq.s32.totalorder %s19, 0
      %p51 = por %p49, %p50
      %p52 = scmp.ne.s32.totalorder %s41, %s44
      %p53 = scmp.eq.s32.totalorder %s24, 3
      %p54 = por %p52, %p53
      %p55 = scmp.ne.s32.totalorder %s44, %s45
      %p56 = scmp.eq.s32.totalorder %s24, 0
      %p57 = por %p55, %p56
      %p58 = scmp.ne.s32.totalorder %s44, %s45
      %p59 = scmp.eq.s32.totalorder %s25, 3
      %p60 = por %p58, %p59
      %p62 = scmp.ne.s32.totalorder %s45, %s61
      %p63 = scmp.eq.s32.totalorder %s25, 0
      %p64 = por %p62, %p63
      %s66 = sadd.s32 %s65, 1
      %p69 = scmp.eq.s32.totalorder %s19, 3
      %p70 = scmp.ne.s32.totalorder %s65, %s67
      %p71 = scmp.eq.s32.totalorder %s19, 0
      %p72 = por %p70, %p71
      %p73 = scmp.ne.s32.totalorder %s65, %s67
      %p74 = scmp.eq.s32.totalorder %s24, 3
      %p75 = por %p73, %p74
      %p76 = scmp.ne.s32.totalorder %s67, %s68
      %p77 = scmp.eq.s32.totalorder %s24, 0
      %p78 = por %p76, %p77
      %p79 = scmp.ne.s32.totalorder %s67, %s68
      %p80 = scmp.eq.s32.totalorder %s25, 3
      %p81 = por %p79, %p80
      %p83 = scmp.ne.s32.totalorder %s68, %s82
      %p84 = scmp.eq.s32.totalorder %s25, 0
      %p85 = por %p83, %p84
      %s87 = sadd.s32 %s86, 1
      %p90 = scmp.eq.s32.totalorder %s19, 3
      %p91 = scmp.ne.s32.totalorder %s86, %s88
      %p92 = scmp.eq.s32.totalorder %s19, 0
      %p93 = por %p91, %p92
      %p94 = scmp.ne.s32.totalorder %s86, %s88
      %p95 = scmp.eq.s32.totalorder %s24, 3
      %p96 = por %p94, %p95
      %p97 = scmp.ne.s32.totalorder %s88, %s89
      %p98 = scmp.eq.s32.totalorder %s24, 0
      %p99 = por %p97, %p98
      %p100 = scmp.ne.s32.totalorder %s88, %s89
      %p101 = scmp.eq.s32.totalorder %s25, 3
      %p102 = por %p100, %p101
      %p104 = scmp.ne.s32.totalorder %s89, %s103
      %p105 = scmp.eq.s32.totalorder %s25, 0
      %p106 = por %p104, %p105
      %s108 = sadd.s32 %s107, 1
      %p111 = scmp.eq.s32.totalorder %s19, 3
      %p112 = scmp.ne.s32.totalorder %s107, %s109
      %p113 = scmp.eq.s32.totalorder %s19, 0
      %p114 = por %p112, %p113
      %p115 = scmp.ne.s32.totalorder %s107, %s109
      %p116 = scmp.eq.s32.totalorder %s24, 3
      %p117 = por %p115, %p116
      %p118 = scmp.ne.s32.totalorder %s109, %s110
      %p119 = scmp.eq.s32.totalorder %s24, 0
      %p120 = por %p118, %p119
      %p121 = scmp.ne.s32.totalorder %s109, %s110
      %p122 = scmp.eq.s32.totalorder %s25, 3
      %p123 = por %p121, %p122
      %p125 = scmp.ne.s32.totalorder %s110, %s124
      %p126 = scmp.eq.s32.totalorder %s25, 0
      %p127 = por %p125, %p126
      %s129 = sadd.s32 %s128, 1
      %p132 = scmp.eq.s32.totalorder %s19, 3
      %p133 = scmp.ne.s32.totalorder %s128, %s130
      %p134 = scmp.eq.s32.totalorder %s19, 0
      %p135 = por %p133, %p134
      %p136 = scmp.ne.s32.totalorder %s128, %s130
      %p137 = scmp.eq.s32.totalorder %s24, 3
      %p138 = por %p136, %p137
      %p139 = scmp.ne.s32.totalorder %s130, %s131
      %p140 = scmp.eq.s32.totalorder %s24, 0
      %p141 = por %p139, %p140
      %p142 = scmp.ne.s32.totalorder %s130, %s131
      %p143 = scmp.eq.s32.totalorder %s25, 3
      %p144 = por %p142, %p143
      %p146 = scmp.ne.s32.totalorder %s131, %s145
      %p147 = scmp.eq.s32.totalorder %s25, 0
      %p148 = por %p146, %p147
      %s149 = ssub.s32 %s27, %s34
      %p150 = scmp.eq.s32.totalorder %s149, 0
      %s152 = sadd.s32 %s151, 1
      %s153 = scalar_select %p150, %s151, %s152
      %p156 = pneg %p150
      %p157 = scmp.eq.s32.totalorder %s19, 3
      %p158 = por %p156, %p157
      %p159 = scmp.ne.s32.totalorder %s151, %s154
      %p160 = scmp.eq.s32.totalorder %s19, 0
      %p161 = por %p159, %p160
      %p162 = scmp.ne.s32.totalorder %s151, %s154
      %p163 = scmp.eq.s32.totalorder %s24, 3
      %p164 = por %p162, %p163
      %p165 = scmp.ne.s32.totalorder %s154, %s155
      %p166 = scmp.eq.s32.totalorder %s24, 0
      %p167 = por %p165, %p166
      %p168 = scmp.ne.s32.totalorder %s154, %s155
      %p169 = scmp.eq.s32.totalorder %s25, 3
      %p170 = por %p168, %p169
      %p172 = scmp.ne.s32.totalorder %s155, %s171
      %p173 = scmp.eq.s32.totalorder %s25, 0
      %p174 = por %p172, %p173
      %s175 = ssub.s32 %s27, %s34
      %p176 = scmp.eq.s32.totalorder %s175, 0
      %s178 = sadd.s32 %s177, 1
      %s179 = scalar_select %p176, %s177, %s178
      %p182 = pneg %p176
      %p183 = scmp.eq.s32.totalorder %s19, 3
      %p184 = por %p182, %p183
      %p185 = scmp.ne.s32.totalorder %s177, %s180
      %p186 = scmp.eq.s32.totalorder %s19, 0
      %p187 = por %p185, %p186
      %p188 = scmp.ne.s32.totalorder %s177, %s180
      %p189 = scmp.eq.s32.totalorder %s24, 3
      %p190 = por %p188, %p189
      %p191 = scmp.ne.s32.totalorder %s180, %s181
      %p192 = scmp.eq.s32.totalorder %s24, 0
      %p193 = por %p191, %p192
      %p194 = scmp.ne.s32.totalorder %s180, %s181
      %p195 = scmp.eq.s32.totalorder %s25, 3
      %p196 = por %p194, %p195
      %p198 = scmp.ne.s32.totalorder %s181, %s197
      %p199 = scmp.eq.s32.totalorder %s25, 0
      %p200 = por %p198, %p199
      %s201 = ssub.s32 %s26, %s38
      %s202 = ssub.s32 %s27, %s34
      %s203 = sor.u32 %s201, %s202
      %p204 = scmp.eq.s32.totalorder %s203, 0
      %s206 = sadd.s32 %s205, 1
      %s207 = scalar_select %p204, %s205, %s206
      %p210 = pneg %p204
      %p211 = scmp.eq.s32.totalorder %s19, 3
      %p212 = por %p210, %p211
      %p213 = scmp.ne.s32.totalorder %s205, %s208
      %p214 = scmp.eq.s32.totalorder %s19, 0
      %p215 = por %p213, %p214
      %p216 = scmp.ne.s32.totalorder %s205, %s208
      %p217 = scmp.eq.s32.totalorder %s24, 3
      %p218 = por %p216, %p217
      %p219 = scmp.ne.s32.totalorder %s208, %s209
      %p220 = scmp.eq.s32.totalorder %s24, 0
      %p221 = por %p219, %p220
      %p222 = scmp.ne.s32.totalorder %s208, %s209
      %p223 = scmp.eq.s32.totalorder %s25, 3
      %p224 = por %p222, %p223
      %p226 = scmp.ne.s32.totalorder %s209, %s225
      %p227 = scmp.eq.s32.totalorder %s25, 0
      %p228 = por %p226, %p227
      %p229 = scmp.le.s32.totalorder 1, %s19
      %p230 = scmp.lt.s32.totalorder %s19, 5
      %p231 = pnand %p229, %p230
      %p232 = pneg %p231
      // Predicated region
      $region9: #{tpu_custom_call.1} parent=5 // pred_check
        _
      $region10: #{tpu_custom_call.1} parent=5 // pred_check_branch
        %234 = sbr.rel (%p231) target = $region12
      $region11: #{tpu_custom_call.1} parent=5 // pred_region
        %s235 = ssub.s32 %s19, 1
        // Predicated region
        $region13: #{tpu_custom_call.1} parent=11 // pred_check
          %p236 = pneg %p57
        $region14: #{tpu_custom_call.1} parent=11 // pred_check_branch
          %238 = sbr.rel (%p236) target = $region16
        $region15: #{tpu_custom_call.1} parent=11 // pred_region
          %s239 = smul.u32 8, %s28
          %p240 = scmp.lt.s32.totalorder %s239, 7
          %s241 = scalar_select %p240, %s239, 7
          %s242 = smul.addr %s241, 4
          %s243 = scalar_lea.vmem %s0, %s242
          %s244 = smul.u32 8, %s28
        $region16: #{tpu_custom_call.1} parent=11 // pred_fallthru
          _
        // Predicated region
        $region17: #{tpu_custom_call.1} parent=11 // pred_check
          %p245 = pneg %p78
        $region18: #{tpu_custom_call.1} parent=11 // pred_check_branch
          %247 = sbr.rel (%p245) target = $region20
        $region19: #{tpu_custom_call.1} parent=11 // pred_region
          _
        $region20: #{tpu_custom_call.1} parent=11 // pred_fallthru
          _
        // Predicated region
        $region21: #{tpu_custom_call.1} parent=11 // pred_check
          %p248 = pneg %p99
        $region22: #{tpu_custom_call.1} parent=11 // pred_check_branch
          %250 = sbr.rel (%p248) target = $region24
        $region23: #{tpu_custom_call.1} parent=11 // pred_region
          _
        $region24: #{tpu_custom_call.1} parent=11 // pred_fallthru
          _
        // Predicated region
        $region25: #{tpu_custom_call.1} parent=11 // pred_check
          %p251 = pneg %p120
        $region26: #{tpu_custom_call.1} parent=11 // pred_check_branch
          %253 = sbr.rel (%p251) target = $region28
        $region27: #{tpu_custom_call.1} parent=11 // pred_region
          _
        $region28: #{tpu_custom_call.1} parent=11 // pred_fallthru
          _
        // Predicated region
        $region29: #{tpu_custom_call.1} parent=11 // pred_check
          %p254 = pneg %p141
        $region30: #{tpu_custom_call.1} parent=11 // pred_check_branch
          %256 = sbr.rel (%p254) target = $region32
        $region31: #{tpu_custom_call.1} parent=11 // pred_region
          _
        $region32: #{tpu_custom_call.1} parent=11 // pred_fallthru
          _
      $region12: #{tpu_custom_call.1} parent=5 // pred_fallthru
        _
      %p257 = scmp.lt.s32.totalorder %s19, 4
      // Predicated region
      $region33: #{tpu_custom_call.1} parent=5 // pred_check
        %p258 = pneg %p257
      $region34: #{tpu_custom_call.1} parent=5 // pred_check_branch
        %260 = sbr.rel (%p258) target = $region36
      $region35: #{tpu_custom_call.1} parent=5 // pred_region
        // Predicated region
        $region37: #{tpu_custom_call.1} parent=35 // pred_check
          %p261 = pneg %p161
        $region38: #{tpu_custom_call.1} parent=35 // pred_check_branch
          %263 = sbr.rel (%p261) target = $region40
        $region39: #{tpu_custom_call.1} parent=35 // pred_region
          %s264 = sand.u32 %s151, 1
          %s265 = scalar_lea.sflag [#allocation4], %s264
          %s266 = sand.u32 %s151, 1
          %s267 = smul.addr %s266, 128
          %s268 = scalar_lea.vmem [#allocation3], %s267
          %s269 = smul.u32 2, %s27
          %s271 = ssub.s32 2048, 2048
          %272 = vsyncadd %s265, %s271
          %s273 = smul.addr %s269, 64
          %s274 = scalar_lea.hbm %s5, %s273
          %s275 = sshll.u32 %s268, 4
          %s276 = int_to_ptr.vmem [resolvable:$true] %s275
          %281 = dma.hbm_to_vmem [thread:$0]  %s274, 2048, %s276, %s265, 512, 128, 8
        $region40: #{tpu_custom_call.1} parent=35 // pred_fallthru
          _
        // Predicated region
        $region41: #{tpu_custom_call.1} parent=35 // pred_check
          %p282 = pneg %p187
        $region42: #{tpu_custom_call.1} parent=35 // pred_check_branch
          %284 = sbr.rel (%p282) target = $region44
        $region43: #{tpu_custom_call.1} parent=35 // pred_region
          %s285 = smul.u32 2, %s27
          %p286 = scmp.lt.s32.totalorder %s285, 7
          %s287 = scalar_select %p286, %s285, 7
          %s288 = scalar_lea.vmem %s6, %s287
          %s289 = smul.u32 2, %s27
        $region44: #{tpu_custom_call.1} parent=35 // pred_fallthru
          _
      $region36: #{tpu_custom_call.1} parent=5 // pred_fallthru
        _
      %p290 = scmp.le.s32.totalorder 1, %s19
      %p291 = scmp.lt.s32.totalorder %s19, 5
      %p292 = pnand %p290, %p291
      %p293 = pneg %p292
      // Predicated region
      $region45: #{tpu_custom_call.1} parent=5 // pred_check
        _
      $region46: #{tpu_custom_call.1} parent=5 // pred_check_branch
        %295 = sbr.rel (%p292) target = $region48
      $region47: #{tpu_custom_call.1} parent=5 // pred_region
        %s296 = ssub.s32 %s19, 1
        %s297 = sand.u32 %s154, 1
        %s298 = scalar_lea.sflag [#allocation4], %s297
        %s299 = sand.u32 %s154, 1
        %s300 = smul.addr %s299, 128
        %s301 = scalar_lea.vmem [#allocation3], %s300
        // Predicated region
        $region49: #{tpu_custom_call.1} parent=47 // pred_check
          %p302 = pneg %p167
        $region50: #{tpu_custom_call.1} parent=47 // pred_check_branch
          %304 = sbr.rel (%p302) target = $region52
        $region51: #{tpu_custom_call.1} parent=47 // pred_region
          %305 = dma.done %s298, 2048
        $region52: #{tpu_custom_call.1} parent=47 // pred_fallthru
          _
        %s306 = smul.u32 8, %s28
        %p307 = scmp.lt.s32.totalorder %s306, 7
        %s308 = scalar_select %p307, %s306, 7
        %s309 = smul.addr %s308, 4
        %s310 = scalar_lea.vmem %s0, %s309
        %p311 = pneg %p57
        %p312 = pneg %p54
        %p313 = pneg %p78
        %p314 = pneg %p75
        %p315 = pneg %p99
        %p316 = pneg %p96
        %p317 = pneg %p120
        %p318 = pneg %p117
        %p319 = pneg %p141
        %p320 = pneg %p138
        %s321 = sand.u32 %s154, 1
        %s322 = scalar_lea.sflag [#allocation4], %s321
        %s323 = sand.u32 %s154, 1
        %s324 = smul.addr %s323, 128
        %s325 = scalar_lea.vmem [#allocation3], %s324
        %p326 = pneg %p167
        %p327 = pneg %p164
        %s328 = smul.u32 2, %s29
        %p329 = scmp.lt.s32.totalorder %s328, 7
        %s330 = scalar_select %p329, %s328, 7
        %s331 = scalar_lea.vmem %s6, %s330
        %p332 = pneg %p193
        %p333 = pneg %p190
        %p334 = pneg %p221
        %p335 = pneg %p218
        %s336 = sand.u32 %s208, 1
        %s337 = scalar_lea.sflag [#allocation5], %s336
        %s338 = sand.u32 %s208, 1
        %s339 = smul.addr %s338, 128
        %s340 = scalar_lea.vmem [#allocation6], %s339
        %s341 = smul.u32 8, %s28
        %p342 = scmp.lt.s32.totalorder %s341, 7
        %s343 = scalar_select %p342, %s341, 7
        %s344 = smul.addr %s343, 4
        %s345 = scalar_lea.vmem %s0, %s344
        %s346 = smul.u32 8, %s28
        %s347 = smul.u32 2, %s29
        %s348 = smul.u32 2, %s29
        %p349 = scmp.lt.s32.totalorder %s348, 7
        %s350 = scalar_select %p349, %s348, 7
        %s351 = scalar_lea.vmem %s6, %s350
        %s352 = smul.u32 2, %s29
        %s353 = smul.u32 8, %s28
        %s354 = smul.u32 2, %s29
        %p356 = scmp.eq.s32.totalorder %s29, 0
        // Predicated region
        $region53: #{tpu_custom_call.1} parent=47 // pred_check
          %p357 = pneg %p356
        $region54: #{tpu_custom_call.1} parent=47 // pred_check_branch
          %359 = sbr.rel (%p357) target = $region56
        $region55: #{tpu_custom_call.1} parent=47 // pred_region
          %v360 = vld [vmem:[%s345] sm:$0xf]
          %v361 = vld [vmem:[%s345 + $0x4] sm:$0xf]
          %v362 = vld [vmem:[%s345 + $0x8] sm:$0xf]
          %v363 = vld [vmem:[%s345 + $0xc] sm:$0xf]
          %v364 = vld [vmem:[%s345 + $0x10] sm:$0xf]
          %v365 = vld [vmem:[%s345 + $0x14] sm:$0xf]
          %v366 = vld [vmem:[%s345 + $0x18] sm:$0xf]
          %v367 = vld [vmem:[%s345 + $0x1c] sm:$0xf]
          %v368 = vld [vmem:[%s1] sm:$0xf]
          %v369 = vld [vmem:[%s2] sm:$0x1]
          %v371 = vlaneseq
          %v372 = vshrl.u32 %v371, 7
          %v373 = vsub.s32 0, %v372
          %v374 = vrot.slane %v369, %v373
          %v384 = vunpack.c.l.b16 %v360
          %v385 = vunpack.c.l.b16 %v361
          %v386 = vunpack.c.l.b16 %v362
          %v387 = vunpack.c.l.b16 %v363
          %v388 = vunpack.c.l.b16 %v364
          %v389 = vunpack.c.l.b16 %v365
          %v390 = vunpack.c.l.b16 %v366
          %v391 = vunpack.c.l.b16 %v367
          %v392 = vpack.c.b16 %v385, %v384
          %v393 = vpack.c.b16 %v387, %v386
          %v394 = vpack.c.b16 %v389, %v388
          %v395 = vpack.c.b16 %v391, %v390
          %vm396 = vcmask 64512
          %v398 = vsel %vm396, %v392, 0
          %v401 = vsel %vm396, %v393, 0
          %v404 = vsel %vm396, %v394, 0
          %v407 = vsel %vm396, %v395, 0
          %vm409 = vcmask 1043456
          %v411 = vsel %vm409, %v368, 0
          %413 = vmatprep.subr.bf16.mxu0 0
          %414 = vmatpush1.bf16.msra.mxu0 %v411
          %415 = vmatprep.subr.bf16.mxu0 0
          %416 = vmatpush1.bf16.msra.mxu0 0
          %417 = vmatprep.subr.bf16.mxu0 0
          %418 = vmatpush1.bf16.msra.mxu0 0
          %419 = vmatprep.subr.bf16.mxu0 0
          %420 = vmatpush1.bf16.msra.mxu0 0
          %421 = vmatprep.subr.bf16.mxu0 0
          %422 = vmatpush1.bf16.msra.mxu0 0
          %423 = vmatprep.subr.bf16.mxu0 0
          %424 = vmatpush1.bf16.msra.mxu0 0
          %425 = vmatprep.subr.bf16.mxu0 0
          %426 = vmatpush1.bf16.msra.mxu0 0
          %427 = vmatprep.subr.bf16.mxu0 0
          %428 = vmatpush1.bf16.msra.mxu0 0
          %429 = vmatprep.subr.bf16.mxu0 0
          %430 = vmatpush1.bf16.msra.mxu0 0
          %431 = vmatprep.subr.bf16.mxu0 0
          %432 = vmatpush1.bf16.msra.mxu0 0
          %433 = vmatprep.subr.bf16.mxu0 0
          %434 = vmatpush1.bf16.msra.mxu0 0
          %435 = vmatprep.subr.bf16.mxu0 0
          %436 = vmatpush1.bf16.msra.mxu0 0
          %437 = vmatprep.subr.bf16.mxu0 0
          %438 = vmatpush1.bf16.msra.mxu0 0
          %439 = vmatprep.subr.bf16.mxu0 0
          %440 = vmatpush1.bf16.msra.mxu0 0
          %441 = vmatprep.subr.bf16.mxu0 0
          %442 = vmatpush1.bf16.msra.mxu0 0
          %443 = vmatprep.subr.bf16.mxu0 0
          %444 = vmatpush1.bf16.msra.mxu0 0
          %445 = vmatprep.mubr.bf16.mxu0 0
          %446 = vmatmul.mubr.bf16.gmra.mrb[0].mxu0 %v398
          %v447 = vpop.f32.mrb[0].mxu0
          %v448 = vadd.f32 %v374, %v447
          %v449 = vpop.f32.mrb[0].mxu0
          %v450 = vpop.f32.mrb[0].mxu0
          %v451 = vadd.f32 %v374, %v450
          %v452 = vpop.f32.mrb[0].mxu0
          %453 = vmatprep.mubr.bf16.mxu0 0
          %454 = vmatmul.mubr.bf16.gmra.mrb[0].mxu0 %v401
          %v455 = vpop.f32.mrb[0].mxu0
          %v456 = vadd.f32 %v374, %v455
          %v457 = vpop.f32.mrb[0].mxu0
          %v458 = vpop.f32.mrb[0].mxu0
          %v459 = vadd.f32 %v374, %v458
          %v460 = vpop.f32.mrb[0].mxu0
          %461 = vmatprep.mubr.bf16.mxu0 0
          %462 = vmatmul.mubr.bf16.gmra.mrb[0].mxu0 %v404
          %v463 = vpop.f32.mrb[0].mxu0
          %v464 = vadd.f32 %v374, %v463
          %v465 = vpop.f32.mrb[0].mxu0
          %v466 = vpop.f32.mrb[0].mxu0
          %v467 = vadd.f32 %v374, %v466
          %v468 = vpop.f32.mrb[0].mxu0
          %469 = vmatprep.mubr.bf16.mxu0 0
          %470 = vmatmul.mubr.bf16.gmra.mrb[0].mxu0 %v407
          %v471 = vpop.f32.mrb[0].mxu0
          %v472 = vadd.f32 %v374, %v471
          %v473 = vpop.f32.mrb[0].mxu0
          %v474 = vpop.f32.mrb[0].mxu0
          %v475 = vadd.f32 %v374, %v474
          %v476 = vpop.f32.mrb[0].mxu0
          %477 = vdwg.mxu0
          %vm478 = vcmp.gt.f32.partialorder %v448, 0.0
          %vm479 = vcmp.gt.f32.partialorder %v451, 0.0
          %vm480 = vcmp.gt.f32.partialorder %v456, 0.0
          %vm481 = vcmp.gt.f32.partialorder %v459, 0.0
          %vm482 = vcmp.gt.f32.partialorder %v464, 0.0
          %vm483 = vcmp.gt.f32.partialorder %v467, 0.0
          %vm484 = vcmp.gt.f32.partialorder %v472, 0.0
          %vm485 = vcmp.gt.f32.partialorder %v475, 0.0
          %v486 = vmin.f32 %v448, 0.0
          %v487 = vmin.f32 %v451, 0.0
          %v488 = vmin.f32 %v456, 0.0
          %v489 = vmin.f32 %v459, 0.0
          %v490 = vmin.f32 %v464, 0.0
          %v491 = vmin.f32 %v467, 0.0
          %v492 = vmin.f32 %v472, 0.0
          %v493 = vmin.f32 %v475, 0.0
          %v494 = vmul.f32 %v486, 1.442695
          %v495 = vpow.pop %v494
          %v496 = vmul.f32 %v487, 1.442695
          %v497 = vpow.pop %v496
          %v498 = vmul.f32 %v488, 1.442695
          %v499 = vpow.pop %v498
          %v500 = vmul.f32 %v489, 1.442695
          %v501 = vpow.pop %v500
          %v502 = vmul.f32 %v490, 1.442695
          %v503 = vpow.pop %v502
          %v504 = vmul.f32 %v491, 1.442695
          %v505 = vpow.pop %v504
          %v506 = vmul.f32 %v492, 1.442695
          %v507 = vpow.pop %v506
          %v508 = vmul.f32 %v493, 1.442695
          %v509 = vpow.pop %v508
          %v510 = vsub.f32 %v495, 1.0
          %v511 = vsub.f32 %v497, 1.0
          %v512 = vsub.f32 %v499, 1.0
          %v513 = vsub.f32 %v501, 1.0
          %v514 = vsub.f32 %v503, 1.0
          %v515 = vsub.f32 %v505, 1.0
          %v516 = vsub.f32 %v507, 1.0
          %v517 = vsub.f32 %v509, 1.0
          %v518 = vsel %vm478, %v448, %v510
          %v519 = vsel %vm479, %v451, %v511
          %v520 = vsel %vm480, %v456, %v512
          %v521 = vsel %vm481, %v459, %v513
          %v522 = vsel %vm482, %v464, %v514
          %v523 = vsel %vm483, %v467, %v515
          %v524 = vsel %vm484, %v472, %v516
          %v525 = vsel %vm485, %v475, %v517
          %v526 = vpack.c.bf16 %v519, %v518
          %v527 = vpack.c.bf16 %v521, %v520
          %v528 = vpack.c.bf16 %v523, %v522
          %v529 = vpack.c.bf16 %v525, %v524
          %v530 = vld [vmem:[%s3] sm:$0xf]
          %v531 = vld [vmem:[%s3 + $0x4] sm:$0xf]
          %v532 = vld [vmem:[%s3 + $0x8] sm:$0xf]
          %v533 = vld [vmem:[%s3 + $0xc] sm:$0xf]
          %v534 = vld [vmem:[%s3 + $0x10] sm:$0xf]
          %v535 = vld [vmem:[%s3 + $0x14] sm:$0xf]
          %v536 = vld [vmem:[%s3 + $0x18] sm:$0xf]
          %v537 = vld [vmem:[%s3 + $0x1c] sm:$0xf]
          %v538 = vld [vmem:[%s4] sm:$0x1]
          %v540 = vlaneseq
          %v541 = vshrl.u32 %v540, 7
          %v542 = vsub.s32 0, %v541
          %v543 = vrot.slane %v538, %v542
          %v553 = vunpack.c.l.b16 %v530
          %v554 = vunpack.c.l.b16 %v531
          %v555 = vunpack.c.l.b16 %v532
          %v556 = vunpack.c.l.b16 %v533
          %v557 = vunpack.c.l.b16 %v534
          %v558 = vunpack.c.l.b16 %v535
          %v559 = vunpack.c.l.b16 %v536
          %v560 = vunpack.c.l.b16 %v537
          %v561 = vpack.c.b16 %v554, %v553
          %v562 = vpack.c.b16 %v556, %v555
          %v563 = vpack.c.b16 %v558, %v557
          %v564 = vpack.c.b16 %v560, %v559
          %vm569 = vcmask 523264
          %v571 = vsel %vm569, %v526, 0
          %v574 = vsel %vm569, %v527, 0
          %v577 = vsel %vm569, %v528, 0
          %v580 = vsel %vm569, %v529, 0
          %582 = vmatprep.subr.bf16.mxu0 0
          %583 = vmatpush1.bf16.msra.mxu0 %v561
          %584 = vmatprep.subr.bf16.mxu0 0
          %585 = vmatpush1.bf16.msra.mxu0 %v562
          %586 = vmatprep.subr.bf16.mxu0 0
          %587 = vmatpush1.bf16.msra.mxu0 %v563
          %588 = vmatprep.subr.bf16.mxu0 0
          %589 = vmatpush1.bf16.msra.mxu0 %v564
          %590 = vmatprep.subr.bf16.mxu0 0
          %591 = vmatpush1.bf16.msra.mxu0 0
          %592 = vmatprep.subr.bf16.mxu0 0
          %593 = vmatpush1.bf16.msra.mxu0 0
          %594 = vmatprep.subr.bf16.mxu0 0
          %595 = vmatpush1.bf16.msra.mxu0 0
          %596 = vmatprep.subr.bf16.mxu0 0
          %597 = vmatpush1.bf16.msra.mxu0 0
          %598 = vmatprep.subr.bf16.mxu0 0
          %599 = vmatpush1.bf16.msra.mxu0 0
          %600 = vmatprep.subr.bf16.mxu0 0
          %601 = vmatpush1.bf16.msra.mxu0 0
          %602 = vmatprep.subr.bf16.mxu0 0
          %603 = vmatpush1.bf16.msra.mxu0 0
          %604 = vmatprep.subr.bf16.mxu0 0
          %605 = vmatpush1.bf16.msra.mxu0 0
          %606 = vmatprep.subr.bf16.mxu0 0
          %607 = vmatpush1.bf16.msra.mxu0 0
          %608 = vmatprep.subr.bf16.mxu0 0
          %609 = vmatpush1.bf16.msra.mxu0 0
          %610 = vmatprep.subr.bf16.mxu0 0
          %611 = vmatpush1.bf16.msra.mxu0 0
          %612 = vmatprep.subr.bf16.mxu0 0
          %613 = vmatpush1.bf16.msra.mxu0 0
          %614 = vmatprep.mubr.bf16.mxu0 0
          %615 = vmatmul.mubr.bf16.gmra.mrb[0].mxu0 %v571
          %v616 = vpop.f32.mrb[0].mxu0
          %v617 = vadd.f32 %v543, %v616
          %v618 = vpop.f32.mrb[0].mxu0
          %v619 = vpop.f32.mrb[0].mxu0
          %v620 = vadd.f32 %v543, %v619
          %v621 = vpop.f32.mrb[0].mxu0
          %622 = vmatprep.mubr.bf16.mxu0 0
          %623 = vmatmul.mubr.bf16.gmra.mrb[0].mxu0 %v574
          %v624 = vpop.f32.mrb[0].mxu0
          %v625 = vadd.f32 %v543, %v624
          %v626 = vpop.f32.mrb[0].mxu0
          %v627 = vpop.f32.mrb[0].mxu0
          %v628 = vadd.f32 %v543, %v627
          %v629 = vpop.f32.mrb[0].mxu0
          %630 = vmatprep.mubr.bf16.mxu0 0
          %631 = vmatmul.mubr.bf16.gmra.mrb[0].mxu0 %v577
          %v632 = vpop.f32.mrb[0].mxu0
          %v633 = vadd.f32 %v543, %v632
          %v634 = vpop.f32.mrb[0].mxu0
          %v635 = vpop.f32.mrb[0].mxu0
          %v636 = vadd.f32 %v543, %v635
          %v637 = vpop.f32.mrb[0].mxu0
          %638 = vmatprep.mubr.bf16.mxu0 0
          %639 = vmatmul.mubr.bf16.gmra.mrb[0].mxu0 %v580
          %v640 = vpop.f32.mrb[0].mxu0
          %v641 = vadd.f32 %v543, %v640
          %v642 = vpop.f32.mrb[0].mxu0
          %v643 = vpop.f32.mrb[0].mxu0
          %v644 = vadd.f32 %v543, %v643
          %v645 = vpop.f32.mrb[0].mxu0
          %646 = vdwg.mxu0
          %vm647 = vcmp.gt.f32.partialorder %v617, 0.0
          %vm648 = vcmp.gt.f32.partialorder %v620, 0.0
          %vm649 = vcmp.gt.f32.partialorder %v625, 0.0
          %vm650 = vcmp.gt.f32.partialorder %v628, 0.0
          %vm651 = vcmp.gt.f32.partialorder %v633, 0.0
          %vm652 = vcmp.gt.f32.partialorder %v636, 0.0
          %vm653 = vcmp.gt.f32.partialorder %v641, 0.0
          %vm654 = vcmp.gt.f32.partialorder %v644, 0.0
          %v655 = vmin.f32 %v617, 0.0
          %v656 = vmin.f32 %v620, 0.0
          %v657 = vmin.f32 %v625, 0.0
          %v658 = vmin.f32 %v628, 0.0
          %v659 = vmin.f32 %v633, 0.0
          %v660 = vmin.f32 %v636, 0.0
          %v661 = vmin.f32 %v641, 0.0
          %v662 = vmin.f32 %v644, 0.0
          %v663 = vmul.f32 %v655, 1.442695
          %v664 = vpow.pop %v663
          %v665 = vmul.f32 %v656, 1.442695
          %v666 = vpow.pop %v665
          %v667 = vmul.f32 %v657, 1.442695
          %v668 = vpow.pop %v667
          %v669 = vmul.f32 %v658, 1.442695
          %v670 = vpow.pop %v669
          %v671 = vmul.f32 %v659, 1.442695
          %v672 = vpow.pop %v671
          %v673 = vmul.f32 %v660, 1.442695
          %v674 = vpow.pop %v673
          %v675 = vmul.f32 %v661, 1.442695
          %v676 = vpow.pop %v675
          %v677 = vmul.f32 %v662, 1.442695
          %v678 = vpow.pop %v677
          %v679 = vsub.f32 %v664, 1.0
          %v680 = vsub.f32 %v666, 1.0
          %v681 = vsub.f32 %v668, 1.0
          %v682 = vsub.f32 %v670, 1.0
          %v683 = vsub.f32 %v672, 1.0
          %v684 = vsub.f32 %v674, 1.0
          %v685 = vsub.f32 %v676, 1.0
          %v686 = vsub.f32 %v678, 1.0
          %v687 = vsel %vm647, %v617, %v679
          %v688 = vsel %vm648, %v620, %v680
          %v689 = vsel %vm649, %v625, %v681
          %v690 = vsel %vm650, %v628, %v682
          %v691 = vsel %vm651, %v633, %v683
          %v692 = vsel %vm652, %v636, %v684
          %v693 = vsel %vm653, %v641, %v685
          %v694 = vsel %vm654, %v644, %v686
          %v695 = vpack.c.bf16 %v688, %v687
          %v696 = vpack.c.bf16 %v690, %v689
          %v697 = vpack.c.bf16 %v692, %v691
          %v698 = vpack.c.bf16 %v694, %v693
          %699 = vst [vmem:[#allocation2] sm:$0xff] %v695
          %700 = vst [vmem:[#allocation2 + $0x8] sm:$0xff] %v696
          %701 = vst [vmem:[#allocation2 + $0x10] sm:$0xff] %v697
          %702 = vst [vmem:[#allocation2 + $0x18] sm:$0xff] %v698
        $region56: #{tpu_custom_call.1} parent=47 // pred_fallthru
          _
        %v703 = vld [vmem:[#allocation2] sm:$0xff]
        %v704 = vld [vmem:[#allocation2 + $0x8] sm:$0xff]
        %v705 = vld [vmem:[#allocation2 + $0x10] sm:$0xff]
        %v706 = vld [vmem:[#allocation2 + $0x18] sm:$0xff]
        %v707 = vld [vmem:[%s301] sm:$0xff]
        %v708 = vld [vmem:[%s301 + $0x8] sm:$0xff]
        %v709 = vld [vmem:[%s301 + $0x10] sm:$0xff]
        %v710 = vld [vmem:[%s301 + $0x18] sm:$0xff]
        %v711 = vld [vmem:[%s301 + $0x20] sm:$0xff]
        %v712 = vld [vmem:[%s301 + $0x28] sm:$0xff]
        %v713 = vld [vmem:[%s301 + $0x30] sm:$0xff]
        %v714 = vld [vmem:[%s301 + $0x38] sm:$0xff]
        %v715 = vld [vmem:[%s301 + $0x40] sm:$0xff]
        %v716 = vld [vmem:[%s301 + $0x48] sm:$0xff]
        %v717 = vld [vmem:[%s301 + $0x50] sm:$0xff]
        %v718 = vld [vmem:[%s301 + $0x58] sm:$0xff]
        %v719 = vld [vmem:[%s301 + $0x60] sm:$0xff]
        %v720 = vld [vmem:[%s301 + $0x68] sm:$0xff]
        %v721 = vld [vmem:[%s301 + $0x70] sm:$0xff]
        %v722 = vld [vmem:[%s301 + $0x78] sm:$0xff]
        %v723 = vld [vmem:[%s351] sm:$0x3]
        %v725 = vlaneseq
        %v726 = vshrl.u32 %v725, 7
        %v727 = vsub.s32 0, %v726
        %v728 = vrot.slane %v723, %v727
        %v729 = vlaneseq
        %v730 = vshrl.u32 %v729, 7
        %v731 = vsub.s32 1, %v730
        %v732 = vrot.slane %v723, %v731
        %v751 = vunpack.c.l.b16 %v707
        %v752 = vunpack.c.h.b16 %v707
        %v753 = vunpack.c.l.b16 %v708
        %v754 = vunpack.c.h.b16 %v708
        %v755 = vunpack.c.l.b16 %v709
        %v756 = vunpack.c.h.b16 %v709
        %v757 = vunpack.c.l.b16 %v710
        %v758 = vunpack.c.h.b16 %v710
        %v759 = vunpack.c.l.b16 %v711
        %v760 = vunpack.c.h.b16 %v711
        %v761 = vunpack.c.l.b16 %v712
        %v762 = vunpack.c.h.b16 %v712
        %v763 = vunpack.c.l.b16 %v713
        %v764 = vunpack.c.h.b16 %v713
        %v765 = vunpack.c.l.b16 %v714
        %v766 = vunpack.c.h.b16 %v714
        %v767 = vunpack.c.l.b16 %v715
        %v768 = vunpack.c.h.b16 %v715
        %v769 = vunpack.c.l.b16 %v716
        %v770 = vunpack.c.h.b16 %v716
        %v771 = vunpack.c.l.b16 %v717
        %v772 = vunpack.c.h.b16 %v717
        %v773 = vunpack.c.l.b16 %v718
        %v774 = vunpack.c.h.b16 %v718
        %v775 = vunpack.c.l.b16 %v719
        %v776 = vunpack.c.h.b16 %v719
        %v777 = vunpack.c.l.b16 %v720
        %v778 = vunpack.c.h.b16 %v720
        %v779 = vunpack.c.l.b16 %v721
        %v780 = vunpack.c.h.b16 %v721
        %v781 = vunpack.c.l.b16 %v722
        %v782 = vunpack.c.h.b16 %v722
        %v783 = vpack.c.b16 %v753, %v751
        %v784 = vpack.c.b16 %v754, %v752
        %v785 = vpack.c.b16 %v757, %v755
        %v786 = vpack.c.b16 %v758, %v756
        %v787 = vpack.c.b16 %v761, %v759
        %v788 = vpack.c.b16 %v762, %v760
        %v789 = vpack.c.b16 %v765, %v763
        %v790 = vpack.c.b16 %v766, %v764
        %v791 = vpack.c.b16 %v769, %v767
        %v792 = vpack.c.b16 %v770, %v768
        %v793 = vpack.c.b16 %v773, %v771
        %v794 = vpack.c.b16 %v774, %v772
        %v795 = vpack.c.b16 %v777, %v775
        %v796 = vpack.c.b16 %v778, %v776
        %v797 = vpack.c.b16 %v781, %v779
        %v798 = vpack.c.b16 %v782, %v780
        %815 = vmatprep.subr.bf16.mxu0 %v784
        %816 = vmatpush1.bf16.msra.mxu0 %v783
        %817 = vmatprep.subr.bf16.mxu0 %v786
        %818 = vmatpush1.bf16.msra.mxu0 %v785
        %819 = vmatprep.subr.bf16.mxu0 %v788
        %820 = vmatpush1.bf16.msra.mxu0 %v787
        %821 = vmatprep.subr.bf16.mxu0 %v790
        %822 = vmatpush1.bf16.msra.mxu0 %v789
        %823 = vmatprep.subr.bf16.mxu0 %v792
        %824 = vmatpush1.bf16.msra.mxu0 %v791
        %825 = vmatprep.subr.bf16.mxu0 %v794
        %826 = vmatpush1.bf16.msra.mxu0 %v793
        %827 = vmatprep.subr.bf16.mxu0 %v796
        %828 = vmatpush1.bf16.msra.mxu0 %v795
        %829 = vmatprep.subr.bf16.mxu0 %v798
        %830 = vmatpush1.bf16.msra.mxu0 %v797
        %831 = vmatprep.subr.bf16.mxu0 0
        %832 = vmatpush1.bf16.msra.mxu0 0
        %833 = vmatprep.subr.bf16.mxu0 0
        %834 = vmatpush1.bf16.msra.mxu0 0
        %835 = vmatprep.subr.bf16.mxu0 0
        %836 = vmatpush1.bf16.msra.mxu0 0
        %837 = vmatprep.subr.bf16.mxu0 0
        %838 = vmatpush1.bf16.msra.mxu0 0
        %839 = vmatprep.subr.bf16.mxu0 0
        %840 = vmatpush1.bf16.msra.mxu0 0
        %841 = vmatprep.subr.bf16.mxu0 0
        %842 = vmatpush1.bf16.msra.mxu0 0
        %843 = vmatprep.subr.bf16.mxu0 0
        %844 = vmatpush1.bf16.msra.mxu0 0
        %845 = vmatprep.subr.bf16.mxu0 0
        %846 = vmatpush1.bf16.msra.mxu0 0
        %847 = vmatprep.mubr.bf16.mxu0 0
        %848 = vmatmul.mubr.bf16.gmra.mrb[0].mxu0 %v703
        %v849 = vpop.f32.mrb[0].mxu0
        %v850 = vadd.f32 %v728, %v849
        %v851 = vpop.f32.mrb[0].mxu0
        %v852 = vadd.f32 %v732, %v851
        %v853 = vpop.f32.mrb[0].mxu0
        %v854 = vadd.f32 %v728, %v853
        %v855 = vpop.f32.mrb[0].mxu0
        %v856 = vadd.f32 %v732, %v855
        %857 = vmatprep.mubr.bf16.mxu0 0
        %858 = vmatmul.mubr.bf16.gmra.mrb[0].mxu0 %v704
        %v859 = vpop.f32.mrb[0].mxu0
        %v860 = vadd.f32 %v728, %v859
        %v861 = vpop.f32.mrb[0].mxu0
        %v862 = vadd.f32 %v732, %v861
        %v863 = vpop.f32.mrb[0].mxu0
        %v864 = vadd.f32 %v728, %v863
        %v865 = vpop.f32.mrb[0].mxu0
        %v866 = vadd.f32 %v732, %v865
        %867 = vmatprep.mubr.bf16.mxu0 0
        %868 = vmatmul.mubr.bf16.gmra.mrb[0].mxu0 %v705
        %v869 = vpop.f32.mrb[0].mxu0
        %v870 = vadd.f32 %v728, %v869
        %v871 = vpop.f32.mrb[0].mxu0
        %v872 = vadd.f32 %v732, %v871
        %v873 = vpop.f32.mrb[0].mxu0
        %v874 = vadd.f32 %v728, %v873
        %v875 = vpop.f32.mrb[0].mxu0
        %v876 = vadd.f32 %v732, %v875
        %877 = vmatprep.mubr.bf16.mxu0 0
        %878 = vmatmul.mubr.bf16.gmra.mrb[0].mxu0 %v706
        %v879 = vpop.f32.mrb[0].mxu0
        %v880 = vadd.f32 %v728, %v879
        %v881 = vpop.f32.mrb[0].mxu0
        %v882 = vadd.f32 %v732, %v881
        %v883 = vpop.f32.mrb[0].mxu0
        %v884 = vadd.f32 %v728, %v883
        %v885 = vpop.f32.mrb[0].mxu0
        %v886 = vadd.f32 %v732, %v885
        %887 = vdwg.mxu0
        %v888 = vtanh.pop %v850
        %v889 = vtanh.pop %v852
        %v890 = vtanh.pop %v854
        %v891 = vtanh.pop %v856
        %v892 = vtanh.pop %v860
        %v893 = vtanh.pop %v862
        %v894 = vtanh.pop %v864
        %v895 = vtanh.pop %v866
        %v896 = vtanh.pop %v870
        %v897 = vtanh.pop %v872
        %v898 = vtanh.pop %v874
        %v899 = vtanh.pop %v876
        %v900 = vtanh.pop %v880
        %v901 = vtanh.pop %v882
        %v902 = vtanh.pop %v884
        %v903 = vtanh.pop %v886
        %904 = vst [vmem:[%s340] sm:$0xff] %v888
        %905 = vst [vmem:[%s340 + $0x8] sm:$0xff] %v889
        %906 = vst [vmem:[%s340 + $0x10] sm:$0xff] %v890
        %907 = vst [vmem:[%s340 + $0x18] sm:$0xff] %v891
        %908 = vst [vmem:[%s340 + $0x20] sm:$0xff] %v892
        %909 = vst [vmem:[%s340 + $0x28] sm:$0xff] %v893
        %910 = vst [vmem:[%s340 + $0x30] sm:$0xff] %v894
        %911 = vst [vmem:[%s340 + $0x38] sm:$0xff] %v895
        %912 = vst [vmem:[%s340 + $0x40] sm:$0xff] %v896
        %913 = vst [vmem:[%s340 + $0x48] sm:$0xff] %v897
        %914 = vst [vmem:[%s340 + $0x50] sm:$0xff] %v898
        %915 = vst [vmem:[%s340 + $0x58] sm:$0xff] %v899
        %916 = vst [vmem:[%s340 + $0x60] sm:$0xff] %v900
        %917 = vst [vmem:[%s340 + $0x68] sm:$0xff] %v901
        %918 = vst [vmem:[%s340 + $0x70] sm:$0xff] %v902
        %919 = vst [vmem:[%s340 + $0x78] sm:$0xff] %v903
        %s920 = sand.u32 %s208, 1
        %s921 = scalar_lea.sflag [#allocation5], %s920
        %s922 = sand.u32 %s208, 1
        %s923 = smul.addr %s922, 128
        %s924 = scalar_lea.vmem [#allocation6], %s923
        // Predicated region
        $region57: #{tpu_custom_call.1} parent=47 // pred_check
          %p925 = pneg %p218
        $region58: #{tpu_custom_call.1} parent=47 // pred_check_branch
          %927 = sbr.rel (%p925) target = $region60
        $region59: #{tpu_custom_call.1} parent=47 // pred_region
          %s928 = smul.u32 8, %s28
          %s929 = smul.u32 2, %s29
          %s931 = ssub.s32 2048, 2048
          %932 = vsyncadd %s921, %s931
          %s933 = smul.addr %s928, 8
          %s934 = sadd.s32 %s929, %s933
          %s935 = smul.addr %s934, 128
          %s936 = scalar_lea.hbm %s7, %s935
          %s937 = sshll.u32 %s924, 4
          %s938 = int_to_ptr.vmem [resolvable:$true] %s937
          %943 = dma.vmem_to_hbm [thread:$0]  %s938, 2048, %s936, %s921, 256, 1024, 16
        $region60: #{tpu_custom_call.1} parent=47 // pred_fallthru
          _
      $region48: #{tpu_custom_call.1} parent=5 // pred_fallthru
        _
      %p944 = scmp.le.s32.totalorder 2, %s19
      // Predicated region
      $region61: #{tpu_custom_call.1} parent=5 // pred_check
        %p945 = pneg %p944
      $region62: #{tpu_custom_call.1} parent=5 // pred_check_branch
        %947 = sbr.rel (%p945) target = $region64
      $region63: #{tpu_custom_call.1} parent=5 // pred_region
        %s948 = ssub.s32 %s19, 2
        // Predicated region
        $region65: #{tpu_custom_call.1} parent=63 // pred_check
          %p949 = pneg %p224
        $region66: #{tpu_custom_call.1} parent=63 // pred_check_branch
          %951 = sbr.rel (%p949) target = $region68
        $region67: #{tpu_custom_call.1} parent=63 // pred_region
          %s952 = sand.u32 %s209, 1
          %s953 = scalar_lea.sflag [#allocation5], %s952
          %s954 = sand.u32 %s209, 1
          %s955 = smul.addr %s954, 128
          %s956 = scalar_lea.vmem [#allocation6], %s955
          %957 = dma.done %s953, 2048
        $region68: #{tpu_custom_call.1} parent=63 // pred_fallthru
          _
      $region64: #{tpu_custom_call.1} parent=5 // pred_fallthru
        _
    $region6: #{tpu_custom_call.1} parent=1 // loop_footer
      %s23 = sadd.s32 1, %s19
    $region7: #{tpu_custom_call.1} parent=1 // loop_footer_branch
      %18 = sbr.rel target = $region3
    $region8: #{tpu_custom_call.1} parent=1 // loop_exit
      _
    %958 = vsyncpa [#allocation4], 1
    %s959 = scalar_lea.sflag [#allocation4], 1
    %960 = vsyncpa %s959, 1
    %961 = vsyncpa [#allocation5], 1
    %s962 = scalar_lea.sflag [#allocation5], 1
    %963 = vsyncpa %s962, 1

</llo_original>
